<compile_context>
chip_gen: v7x
topology: tpu7x:2x2x1
jax: 0.10.0
libtpu: 0.0.40
codegen_flags: <defaults>
</compile_context>

<pallas_src>
import functools
import math

import jax
import jax.numpy as jnp
import numpy as np
from jax.experimental import pallas as pl
from jax.experimental.pallas import tpu as pltpu

_LANES = 128
_MAX_TM = 1024                 # rows per grid step (sublane-aligned tile)
_EPS = 1e-6
_LOG_EPS = math.log(_EPS)


def _pow(x, p):
    """x ** p; small integer exponents become plain VPU multiplies."""
    if float(p).is_integer() and 1 <= int(p) <= 16:
        n, base, result = int(p), x, None
        while n:
            if n & 1:
                result = base if result is None else result * base
            n >>= 1
            if n:
                base = base * base
        return result
    return jnp.power(x, p)


# ----------------------------------------------------------------------------
# Fused focal-loss kernel: elementwise losses + per-split reduction
# ----------------------------------------------------------------------------
def _focal_loss_kernel(pred_ref, tgt_ref, out_ref, loss_acc, npos_acc, *,
                       alpha, beta, n_valid, tm, sps, nblocks, apply_mask):
    j = pl.program_id(0)            # parallel split (one per TensorCore on v7x)
    i = pl.program_id(1)            # reduction steps within the split
    g = j * sps + i                 # logical global row-block index

    @pl.when(i == 0)
    def _init():
        loss_acc[...] = jnp.zeros_like(loss_acc)
        npos_acc[...] = jnp.zeros_like(npos_acc)

    p = pred_ref[...].astype(jnp.float32)
    t = tgt_ref[...].astype(jnp.float32)

    # 2 heavy EUP ops per element (exp in sigmoid + one log). log(1-s) comes
    # from the identity log(1 - sigmoid(p)) = log(sigmoid(p)) - p (VPU sub),
    # clamped to the range the eps-clipped reference can produce.
    s = jnp.clip(jax.nn.sigmoid(p), _EPS, 1.0 - _EPS)
    log_s = jnp.log(s)
    log_1ms = jnp.clip(log_s - p, _LOG_EPS, 0.0)

    pos_inds = jnp.where(t == 1.0, 1.0, 0.0)
    neg_inds = 1.0 - pos_inds          # target in [0, 1] per the module contract
    neg_w = _pow(1.0 - t, beta)

    loss = (-log_s) * _pow(1.0 - s, alpha) * pos_inds \
        + (-log_1ms) * _pow(s, alpha) * neg_w * neg_inds

    if apply_mask:
        # Only the last real row-block (and the possible duplicated overflow
        # step of the last split) can contain padded / out-of-range data.
        @pl.when(g < nblocks - 1)
        def _fast():
            loss_acc[...] += loss
            npos_acc[...] += pos_inds

        @pl.when(g >= nblocks - 1)
        def _tail():
            row = jax.lax.broadcasted_iota(jnp.int32, (tm, _LANES), 0)
            col = jax.lax.broadcasted_iota(jnp.int32, (tm, _LANES), 1)
            grow = g * tm + row                     # global row index (no flat
            full_rows = n_valid // _LANES           # index -> no int32 overflow)
            rem = n_valid % _LANES
            valid = (grow < full_rows) | ((grow == full_rows) & (col < rem))
            # where-select (not multiply): stale data in the over-read region
            # of the ragged block can never inject NaN/Inf into the sums.
            loss_acc[...] += jnp.where(valid, loss, 0.0)
            npos_acc[...] += jnp.where(valid, pos_inds, 0.0)
    else:
        loss_acc[...] += loss
        npos_acc[...] += pos_inds

    @pl.when(i == pl.num_programs(1) - 1)
    def _finalize():
        # Single cross-lane/sublane reduce per split, outside the hot loop.
        out_ref[0, 0, :, :] = jnp.full((8, _LANES), jnp.sum(loss_acc[...]),
                                       jnp.float32)
        out_ref[0, 1, :, :] = jnp.full((8, _LANES), jnp.sum(npos_acc[...]),
                                       jnp.float32)


# ----------------------------------------------------------------------------
# Wrapper
# ----------------------------------------------------------------------------
@functools.partial(jax.jit, static_argnames=("alpha", "beta"))
def sigmoid_focal_loss(pred, target, alpha=2.0, beta=4.0):
    assert pred.shape == target.shape, (pred.shape, target.shape)
    n = int(math.prod(pred.shape))

    p_flat = pred.reshape(-1)
    t_flat = target.reshape(-1)

    # Lane-dense (rows, 128) layout. Only pad the tiny flat tail when
    # n % 128 != 0 (no full-array round-up to a multiple of the row tile).
    rows = -(-n // _LANES)
    n128 = rows * _LANES
    if n128 != n:
        p_flat = jnp.pad(p_flat, (0, n128 - n))
        t_flat = jnp.pad(t_flat, (0, n128 - n))
    p2 = p_flat.reshape(rows, _LANES)
    t2 = t_flat.reshape(rows, _LANES)

    tm = min(_MAX_TM, ((rows + 7) // 8) * 8)      # sublane-aligned row tile
    nblocks = -(-rows // tm)                      # real row-blocks
    num_splits = 2 if nblocks >= 2 else 1         # use both TensorCores on v7x
    sps = -(-nblocks // num_splits)               # grid steps per split

    # Anything (lane pad, ragged last block, duplicated overflow step) to mask?
    apply_mask = (num_splits * sps * tm * _LANES) != n

    kernel = functools.partial(
        _focal_loss_kernel,
        alpha=float(alpha), beta=float(beta),
        n_valid=n, tm=tm, sps=sps, nblocks=nblocks, apply_mask=apply_mask)

    def in_map(j, i):
        # Clamp so the (at most one) overflow step of the last split re-reads
        # the final block instead of DMA-ing out of bounds; it is fully masked.
        return (jnp.minimum(j * sps + i, nblocks - 1), 0)

    parts = pl.pallas_call(
        kernel,
        out_shape=jax.ShapeDtypeStruct((num_splits, 2, 8, _LANES), jnp.float32),
        grid=(num_splits, sps),
        in_specs=[
            pl.BlockSpec((tm, _LANES), in_map),
            pl.BlockSpec((tm, _LANES), in_map),
        ],
        out_specs=pl.BlockSpec((1, 2, 8, _LANES), lambda j, i: (j, 0, 0, 0)),
        scratch_shapes=[
            pltpu.VMEM((tm, _LANES), jnp.float32),   # per-split loss accumulator
            pltpu.VMEM((tm, _LANES), jnp.float32),   # per-split num_pos accumulator
        ],
        compiler_params=pltpu.CompilerParams(
            dimension_semantics=("parallel", "arbitrary"),
            vmem_limit_bytes=32 * 1024 * 1024),
    )(p2, t2)

    loss_sum = jnp.sum(parts[:, 0, 0, 0])
    num_pos = jnp.sum(parts[:, 1, 0, 0])
    return loss_sum / jnp.maximum(num_pos, 1.0)


# ----------------------------------------------------------------------------
# Pure-JAX reference (mirrors the PyTorch forward) for correctness check
# ----------------------------------------------------------------------------
def reference(pred, target, alpha=2.0, beta=4.0):
    eps = 1e-6
    pos_inds = (target == 1.0).astype(jnp.float32)
    neg_inds = (target < 1.0).astype(jnp.float32)
    neg_weights = jnp.power(1.0 - target, beta)
    p = jnp.clip(jax.nn.sigmoid(pred), eps, 1.0 - eps)
    pos_loss = -jnp.log(p) * jnp.power(1.0 - p, alpha) * pos_inds
    neg_loss = -jnp.log(1.0 - p) * jnp.power(p, alpha) * neg_weights * neg_inds
    num_pos = pos_inds.sum()
    return (pos_loss + neg_loss).sum() / jnp.maximum(num_pos, 1.0)


if __name__ == "__main__":
    def make_inputs(key, shape):
        kp, kt, km = jax.random.split(key, 3)
        # pred are raw logits (the module applies .sigmoid() itself)
        pred = jax.random.normal(kp, shape, jnp.float32)
        # target in [0, 1] with some entries exactly 1 (positive centers)
        target = jax.random.uniform(kt, shape, jnp.float32)
        ones_mask = jax.random.bernoulli(km, 0.05, shape)
        target = jnp.where(ones_mask, jnp.float32(1.0), target)
        return pred, target

    # Primary small CenterNet-style heatmap shape
    pred, target = make_inputs(jax.random.PRNGKey(0), (2, 4, 16, 16))
    loss = jax.block_until_ready(sigmoid_focal_loss(pred, target))
    np.testing.assert_allclose(np.asarray(loss), np.asarray(reference(pred, target)),
                               rtol=1e-4, atol=1e-6)

    # Multi-block + dual-split + ragged last row-block + accumulator carry
    pred2, target2 = make_inputs(jax.random.PRNGKey(1), (4, 4, 132, 130))
    loss2 = jax.block_until_ready(sigmoid_focal_loss(pred2, target2))
    np.testing.assert_allclose(np.asarray(loss2), np.asarray(reference(pred2, target2)),
                               rtol=1e-4, atol=1e-6)

    # Lane-ragged case (n % 128 != 0 -> tiny tail pad + lane mask)
    pred3, target3 = make_inputs(jax.random.PRNGKey(2), (2, 3, 17, 19))
    loss3 = jax.block_until_ready(sigmoid_focal_loss(pred3, target3))
    np.testing.assert_allclose(np.asarray(loss3), np.asarray(reference(pred3, target3)),
                               rtol=1e-4, atol=1e-6)

    print("KERNEL_OK")
</pallas_src>

<mosaic_0001>
module attributes {stable_mosaic.version = 11 : i64} {
  func.func @_focal_loss_kernel(%arg0: i32, %arg1: i32, %arg2: memref<16x128xf32, #tpu.memory_space<vmem>>, %arg3: memref<16x128xf32, #tpu.memory_space<vmem>>, %arg4: memref<1x2x8x128xf32, #tpu.memory_space<vmem>>, %arg5: memref<16x128xf32, #tpu.memory_space<vmem>>, %arg6: memref<16x128xf32, #tpu.memory_space<vmem>>) attributes {dimension_semantics = [#tpu.dimension_semantics<parallel>, #tpu.dimension_semantics<arbitrary>], iteration_bounds = array<i64: 1, 1>, scalar_prefetch = 0 : i64, scratch_operands = 2 : i64, tpu.core_type = #tpu.core_type<tc>, window_params = [{transform_indices = @transform_0, window_bounds = array<i64: 16, 128>}, {transform_indices = @transform_1, window_bounds = array<i64: 16, 128>}, {transform_indices = @transform_2, window_bounds = array<i64: 1, 2, 8, 128>}]} {
    %c0_i32 = arith.constant 0 : i32
    %0 = arith.cmpi eq, %arg1, %c0_i32 : i32
    %1 = arith.extui %0 : i1 to i32
    %c0_i32_0 = arith.constant 0 : i32
    %2 = arith.cmpi ne, %1, %c0_i32_0 : i32
    scf.if %2 {
      %cst_26 = arith.constant 0.000000e+00 : f32
      %54 = vector.broadcast %cst_26 : f32 to vector<16x128xf32>
      %c0_27 = arith.constant 0 : index
      %c0_28 = arith.constant 0 : index
      %55 = vector.load %arg5[%c0_27, %c0_28] : memref<16x128xf32, #tpu.memory_space<vmem>>, vector<16x128xf32>
      tpu.vector_store %arg5[%c0_27, %c0_28], %54 {strides = array<i32>} : memref<16x128xf32, #tpu.memory_space<vmem>>, vector<16x128xf32>,
      %cst_29 = arith.constant 0.000000e+00 : f32
      %56 = vector.broadcast %cst_29 : f32 to vector<16x128xf32>
      %c0_30 = arith.constant 0 : index
      %c0_31 = arith.constant 0 : index
      %57 = vector.load %arg6[%c0_30, %c0_31] : memref<16x128xf32, #tpu.memory_space<vmem>>, vector<16x128xf32>
      tpu.vector_store %arg6[%c0_30, %c0_31], %56 {strides = array<i32>} : memref<16x128xf32, #tpu.memory_space<vmem>>, vector<16x128xf32>,
    } else {
    }
    %c0 = arith.constant 0 : index
    %c0_1 = arith.constant 0 : index
    %3 = vector.load %arg2[%c0, %c0_1] : memref<16x128xf32, #tpu.memory_space<vmem>>, vector<16x128xf32>
    %c0_2 = arith.constant 0 : index
    %c0_3 = arith.constant 0 : index
    %4 = vector.load %arg3[%c0_2, %c0_3] : memref<16x128xf32, #tpu.memory_space<vmem>>, vector<16x128xf32>
    %5 = arith.negf %3 : vector<16x128xf32>
    %6 = math.exp %5 : vector<16x128xf32>
    %cst = arith.constant 1.000000e+00 : f32
    %7 = vector.broadcast %cst : f32 to vector<16x128xf32>
    %8 = arith.addf %7, %6 : vector<16x128xf32>
    %9 = arith.divf %7, %8 : vector<16x128xf32>
    %cst_4 = arith.constant 9.99999997E-7 : f32
    %cst_5 = arith.constant 0.999998986 : f32
    %10 = vector.broadcast %cst_4 : f32 to vector<16x128xf32>
    %11 = arith.maximumf %10, %9 : vector<16x128xf32>
    %12 = vector.broadcast %cst_5 : f32 to vector<16x128xf32>
    %13 = arith.minimumf %12, %11 : vector<16x128xf32>
    %14 = math.log %13 : vector<16x128xf32>
    %15 = arith.subf %14, %3 : vector<16x128xf32>
    %cst_6 = arith.constant -13.8155107 : f32
    %cst_7 = arith.constant 0.000000e+00 : f32
    %16 = vector.broadcast %cst_6 : f32 to vector<16x128xf32>
    %17 = arith.maximumf %16, %15 : vector<16x128xf32>
    %18 = vector.broadcast %cst_7 : f32 to vector<16x128xf32>
    %19 = arith.minimumf %18, %17 : vector<16x128xf32>
    %cst_8 = arith.constant 1.000000e+00 : f32
    %20 = vector.broadcast %cst_8 : f32 to vector<16x128xf32>
    %21 = arith.cmpf oeq, %4, %20 : vector<16x128xf32>
    %cst_9 = arith.constant 1.000000e+00 : f32
    %cst_10 = arith.constant 0.000000e+00 : f32
    %22 = vector.broadcast %cst_9 : f32 to vector<16x128xf32>
    %23 = vector.broadcast %cst_10 : f32 to vector<16x128xf32>
    %24 = arith.select %21, %22, %23 : vector<16x128xi1>, vector<16x128xf32>
    %cst_11 = arith.constant 1.000000e+00 : f32
    %25 = vector.broadcast %cst_11 : f32 to vector<16x128xf32>
    %26 = arith.subf %25, %24 : vector<16x128xf32>
    %cst_12 = arith.constant 1.000000e+00 : f32
    %27 = vector.broadcast %cst_12 : f32 to vector<16x128xf32>
    %28 = arith.subf %27, %4 : vector<16x128xf32>
    %29 = arith.mulf %28, %28 : vector<16x128xf32>
    %30 = arith.mulf %29, %29 : vector<16x128xf32>
    %cst_13 = arith.constant 0.000000e+00 : f32
    %31 = vector.broadcast %cst_13 : f32 to vector<16x128xf32>
    %32 = arith.subf %31, %14 : vector<16x128xf32>
    %cst_14 = arith.constant 1.000000e+00 : f32
    %33 = vector.broadcast %cst_14 : f32 to vector<16x128xf32>
    %34 = arith.subf %33, %13 : vector<16x128xf32>
    %35 = arith.mulf %34, %34 : vector<16x128xf32>
    %36 = arith.mulf %32, %35 : vector<16x128xf32>
    %37 = arith.mulf %36, %24 : vector<16x128xf32>
    %cst_15 = arith.constant 0.000000e+00 : f32
    %38 = vector.broadcast %cst_15 : f32 to vector<16x128xf32>
    %39 = arith.subf %38, %19 : vector<16x128xf32>
    %40 = arith.mulf %13, %13 : vector<16x128xf32>
    %41 = arith.mulf %39, %40 : vector<16x128xf32>
    %42 = arith.mulf %41, %30 : vector<16x128xf32>
    %43 = arith.mulf %42, %26 : vector<16x128xf32>
    %44 = arith.addf %37, %43 : vector<16x128xf32>
    %c0_16 = arith.constant 0 : index
    %c0_17 = arith.constant 0 : index
    %45 = vector.load %arg5[%c0_16, %c0_17] : memref<16x128xf32, #tpu.memory_space<vmem>>, vector<16x128xf32>
    %46 = arith.addf %45, %44 : vector<16x128xf32>
    %c0_18 = arith.constant 0 : index
    %c0_19 = arith.constant 0 : index
    %47 = vector.load %arg5[%c0_18, %c0_19] : memref<16x128xf32, #tpu.memory_space<vmem>>, vector<16x128xf32>
    tpu.vector_store %arg5[%c0_18, %c0_19], %46 {strides = array<i32>} : memref<16x128xf32, #tpu.memory_space<vmem>>, vector<16x128xf32>,
    %c0_20 = arith.constant 0 : index
    %c0_21 = arith.constant 0 : index
    %48 = vector.load %arg6[%c0_20, %c0_21] : memref<16x128xf32, #tpu.memory_space<vmem>>, vector<16x128xf32>
    %49 = arith.addf %48, %24 : vector<16x128xf32>
    %c0_22 = arith.constant 0 : index
    %c0_23 = arith.constant 0 : index
    %50 = vector.load %arg6[%c0_22, %c0_23] : memref<16x128xf32, #tpu.memory_space<vmem>>, vector<16x128xf32>
    tpu.vector_store %arg6[%c0_22, %c0_23], %49 {strides = array<i32>} : memref<16x128xf32, #tpu.memory_space<vmem>>, vector<16x128xf32>,
    %c0_i32_24 = arith.constant 0 : i32
    %51 = arith.cmpi eq, %arg1, %c0_i32_24 : i32
    %52 = arith.extui %51 : i1 to i32
    %c0_i32_25 = arith.constant 0 : i32
    %53 = arith.cmpi ne, %52, %c0_i32_25 : i32
    scf.if %53 {
      %c0_26 = arith.constant 0 : index
      %c0_27 = arith.constant 0 : index
      %54 = vector.load %arg5[%c0_26, %c0_27] : memref<16x128xf32, #tpu.memory_space<vmem>>, vector<16x128xf32>
      %55 = vector.shape_cast %54 : vector<16x128xf32> to vector<1x16x128xf32>
      %cst_28 = arith.constant dense<0.000000e+00> : vector<1xf32>
      %56 = vector.multi_reduction <add>, %55, %cst_28 [1, 2] : vector<1x16x128xf32> to vector<1xf32>
      %57 = vector.shape_cast %56 : vector<1xf32> to vector<1x1x1xf32>
      %58 = vector.extract %57[0, 0, 0] : f32 from vector<1x1x1xf32>
      %59 = vector.broadcast %58 : f32 to vector<8x128xf32>
      %c0_29 = arith.constant 0 : index
      %c0_30 = arith.constant 0 : index
      %c0_31 = arith.constant 0 : index
      %c0_32 = arith.constant 0 : index
      %60 = vector.load %arg4[%c0_29, %c0_30, %c0_31, %c0_32] : memref<1x2x8x128xf32, #tpu.memory_space<vmem>>, vector<1x1x8x128xf32>
      %61 = vector.shape_cast %60 : vector<1x1x8x128xf32> to vector<8x128xf32>
      %62 = vector.shape_cast %59 : vector<8x128xf32> to vector<1x1x8x128xf32>
      tpu.vector_store %arg4[%c0_29, %c0_30, %c0_31, %c0_32], %62 {strides = array<i32>} : memref<1x2x8x128xf32, #tpu.memory_space<vmem>>, vector<1x1x8x128xf32>,
      %c0_33 = arith.constant 0 : index
      %c0_34 = arith.constant 0 : index
      %63 = vector.load %arg6[%c0_33, %c0_34] : memref<16x128xf32, #tpu.memory_space<vmem>>, vector<16x128xf32>
      %64 = vector.shape_cast %63 : vector<16x128xf32> to vector<1x16x128xf32>
      %cst_35 = arith.constant dense<0.000000e+00> : vector<1xf32>
      %65 = vector.multi_reduction <add>, %64, %cst_35 [1, 2] : vector<1x16x128xf32> to vector<1xf32>
      %66 = vector.shape_cast %65 : vector<1xf32> to vector<1x1x1xf32>
      %67 = vector.extract %66[0, 0, 0] : f32 from vector<1x1x1xf32>
      %68 = vector.broadcast %67 : f32 to vector<8x128xf32>
      %c0_36 = arith.constant 0 : index
      %c1 = arith.constant 1 : index
      %c0_37 = arith.constant 0 : index
      %c0_38 = arith.constant 0 : index
      %69 = vector.load %arg4[%c0_36, %c1, %c0_37, %c0_38] : memref<1x2x8x128xf32, #tpu.memory_space<vmem>>, vector<1x1x8x128xf32>
      %70 = vector.shape_cast %69 : vector<1x1x8x128xf32> to vector<8x128xf32>
      %71 = vector.shape_cast %68 : vector<8x128xf32> to vector<1x1x8x128xf32>
      tpu.vector_store %arg4[%c0_36, %c1, %c0_37, %c0_38], %71 {strides = array<i32>} : memref<1x2x8x128xf32, #tpu.memory_space<vmem>>, vector<1x1x8x128xf32>,
    } else {
    }
    return
  }
  func.func @transform_0(%arg0: i32, %arg1: i32) -> (i32, i32) {
    %c1_i32 = arith.constant 1 : i32
    %0 = arith.muli %arg0, %c1_i32 : i32
    %1 = arith.addi %0, %arg1 : i32
    %c0_i32 = arith.constant 0 : i32
    %2 = arith.minsi %1, %c0_i32 : i32
    %c0_i32_0 = arith.constant 0 : i32
    %c0_i32_1 = arith.constant 0 : i32
    return %2, %c0_i32_0 : i32, i32
  }
  func.func @transform_1(%arg0: i32, %arg1: i32) -> (i32, i32) {
    %c1_i32 = arith.constant 1 : i32
    %0 = arith.muli %arg0, %c1_i32 : i32
    %1 = arith.addi %0, %arg1 : i32
    %c0_i32 = arith.constant 0 : i32
    %2 = arith.minsi %1, %c0_i32 : i32
    %c0_i32_0 = arith.constant 0 : i32
    %c0_i32_1 = arith.constant 0 : i32
    return %2, %c0_i32_0 : i32, i32
  }
  func.func @transform_2(%arg0: i32, %arg1: i32) -> (i32, i32, i32, i32) {
    %c0_i32 = arith.constant 0 : i32
    %c0_i32_0 = arith.constant 0 : i32
    %c0_i32_1 = arith.constant 0 : i32
    %c0_i32_2 = arith.constant 0 : i32
    return %arg0, %c0_i32, %c0_i32_0, %c0_i32_1 : i32, i32, i32, i32
  }
}

</mosaic_0001>

<llo_original>
// kernel: sigmoid_focal_loss.1
$region0: #{sigmoid_focal_loss.1}
  #allocation0 [shape = 'u32[]', space=smem, size = 0x4, offset = 0x4, fixed_abs, tag = 'smem constant byte address 0x4 - core index']
  #allocation1 [shape = 'u32[144,128]{1,0:T(1,128)}', space=vmem, size = 0x12000, scoped, tag = 'internal scratch']
  #allocation2 [shape = 'f32[16,128]{1,0:T(8,128)}', space=vmem, size = 0x2000, scoped, tag = 'scratch operand']
  #allocation3 [shape = 'f32[16,128]{1,0:T(8,128)}', space=vmem, size = 0x2000, scoped, tag = 'scratch operand']
  %s0 = inlined_call_operand.vmem [shape: f32[16,128], index: 0, kind: input, shape index: {}]
  %s1 = inlined_call_operand.vmem [shape: f32[16,128], index: 1, kind: input, shape index: {}]
  %s2 = inlined_call_operand.vmem [shape: f32[1,2,8,128], index: 2, kind: output, shape index: {}]
  %s3 = sld [smem:[#allocation0]]
  $region26: #{sigmoid_focal_loss.1} parent=0
    _
  %s5 = ssub.s32 1, %s3
  %s6 = scalar_select 0, %s5, %s3
  // Predicated region
  $region2: #{sigmoid_focal_loss.1} parent=0 // pred_check
    _
  $region3: #{sigmoid_focal_loss.1} parent=0 // pred_check_branch
    %8 = sbr.rel (0) target = $region5
  $region4: #{sigmoid_focal_loss.1} parent=0 // pred_region
    %s9 = sadd.s32 0, 0
    %p10 = scmp.lt.s32.totalorder %s9, 0
    %s11 = scalar_select %p10, %s9, 0
    %s12 = smul.u32 2, %s11
    %p13 = scmp.lt.s32.totalorder %s12, 1
    %s14 = scalar_select %p13, %s12, 1
    %s15 = smul.addr %s14, 8
    %s16 = scalar_lea.vmem %s0, %s15
    %s17 = sadd.s32 0, 0
    %p18 = scmp.lt.s32.totalorder %s17, 0
    %s19 = scalar_select %p18, %s17, 0
    %s20 = smul.u32 2, %s19
  $region5: #{sigmoid_focal_loss.1} parent=0 // pred_fallthru
    _
  // Predicated region
  $region6: #{sigmoid_focal_loss.1} parent=0 // pred_check
    _
  $region7: #{sigmoid_focal_loss.1} parent=0 // pred_check_branch
    %22 = sbr.rel (0) target = $region9
  $region8: #{sigmoid_focal_loss.1} parent=0 // pred_region
    %s23 = sadd.s32 0, 0
    %p24 = scmp.lt.s32.totalorder %s23, 0
    %s25 = scalar_select %p24, %s23, 0
    %s26 = smul.u32 2, %s25
    %p27 = scmp.lt.s32.totalorder %s26, 1
    %s28 = scalar_select %p27, %s26, 1
    %s29 = smul.addr %s28, 8
    %s30 = scalar_lea.vmem %s1, %s29
    %s31 = sadd.s32 0, 0
    %p32 = scmp.lt.s32.totalorder %s31, 0
    %s33 = scalar_select %p32, %s31, 0
    %s34 = smul.u32 2, %s33
  $region9: #{sigmoid_focal_loss.1} parent=0 // pred_fallthru
    _
  %s35 = sadd.s32 0, 0
  %p36 = scmp.lt.s32.totalorder %s35, 0
  %s37 = scalar_select %p36, %s35, 0
  %s38 = smul.u32 2, %s37
  %p39 = scmp.lt.s32.totalorder %s38, 1
  %s40 = scalar_select %p39, %s38, 1
  %s41 = smul.addr %s40, 8
  %s42 = scalar_lea.vmem %s0, %s41
  %s43 = sadd.s32 0, 0
  %p44 = scmp.lt.s32.totalorder %s43, 0
  %s45 = scalar_select %p44, %s43, 0
  %s46 = smul.u32 2, %s45
  %p47 = scmp.lt.s32.totalorder %s46, 1
  %s48 = scalar_select %p47, %s46, 1
  %s49 = smul.addr %s48, 8
  %s50 = scalar_lea.vmem %s1, %s49
  %s51 = sadd.s32 0, 0
  %p52 = scmp.lt.s32.totalorder %s51, 0
  %s53 = scalar_select %p52, %s51, 0
  %s54 = smul.u32 2, %s53
  %p55 = scmp.lt.s32.totalorder %s54, 1
  %s56 = scalar_select %p55, %s54, 1
  %s57 = smul.addr %s56, 8
  %s58 = scalar_lea.vmem %s0, %s57
  %s59 = sadd.s32 0, 0
  %p60 = scmp.lt.s32.totalorder %s59, 0
  %s61 = scalar_select %p60, %s59, 0
  %s62 = smul.u32 2, %s61
  %s63 = sadd.s32 0, 0
  %p64 = scmp.lt.s32.totalorder %s63, 0
  %s65 = scalar_select %p64, %s63, 0
  %s66 = smul.u32 2, %s65
  %p67 = scmp.lt.s32.totalorder %s66, 1
  %s68 = scalar_select %p67, %s66, 1
  %s69 = smul.addr %s68, 8
  %s70 = scalar_lea.vmem %s1, %s69
  %s71 = sadd.s32 0, 0
  %p72 = scmp.lt.s32.totalorder %s71, 0
  %s73 = scalar_select %p72, %s71, 0
  %s74 = smul.u32 2, %s73
  %p75 = scmp.eq.s32.totalorder 0, 0
  // Predicated region
  $region10: #{sigmoid_focal_loss.1} parent=0 // pred_check
    %p76 = pneg %p75
  $region11: #{sigmoid_focal_loss.1} parent=0 // pred_check_branch
    %78 = sbr.rel (%p76) target = $region13
  $region12: #{sigmoid_focal_loss.1} parent=0 // pred_region
    %79 = vst [vmem:[#allocation2] sm:$0xff] 0.0
    %80 = vst [vmem:[#allocation2 + $0x8] sm:$0xff] 0.0
    %81 = vst [vmem:[#allocation3] sm:$0xff] 0.0
    %82 = vst [vmem:[#allocation3 + $0x8] sm:$0xff] 0.0
  $region13: #{sigmoid_focal_loss.1} parent=0 // pred_fallthru
    _
  %v83 = vld [vmem:[%s58] sm:$0xff]
  %v84 = vld [vmem:[%s58 + $0x8] sm:$0xff]
  %v85 = vld [vmem:[%s70] sm:$0xff]
  %v86 = vld [vmem:[%s70 + $0x8] sm:$0xff]
  %v87 = vxor.u32 %v83, 2147483648
  %v88 = vxor.u32 %v84, 2147483648
  %v89 = vmul.f32 %v87, 1.442695
  %v90 = vpow.pop %v89
  %v91 = vmul.f32 %v88, 1.442695
  %v92 = vpow.pop %v91
  %v93 = vadd.f32 %v90, 1.0
  %v94 = vadd.f32 %v92, 1.0
  %v95 = vrcp.pop %v93
  %v96 = vmul.f32 1.0, %v95
  %v97 = vrcp.pop %v94
  %v98 = vmul.f32 1.0, %v97
  %v99 = vmax.f32 %v96, 1e-06
  %v100 = vmax.f32 %v98, 1e-06
  %v101 = vmin.f32 %v99, 0.999999
  %v102 = vmin.f32 %v100, 0.999999
  %v103 = vlog2.pop %v101
  %v104 = vmul.f32 %v103, 0.6931472
  %v105 = vlog2.pop %v102
  %v106 = vmul.f32 %v105, 0.6931472
  %v107 = vsub.f32 %v104, %v83
  %v108 = vsub.f32 %v106, %v84
  %v109 = vmax.f32 %v107, -13.815511
  %v110 = vmax.f32 %v108, -13.815511
  %v111 = vmin.f32 %v109, 0.0
  %v112 = vmin.f32 %v110, 0.0
  %vm113 = vcmp.eq.f32.partialorder %v85, 1.0
  %vm114 = vcmp.eq.f32.partialorder %v86, 1.0
  %v115 = vsel %vm113, 1.0, 0.0
  %v116 = vsel %vm114, 1.0, 0.0
  %v117 = vsub.f32 1.0, %v115
  %v118 = vsub.f32 1.0, %v116
  %v119 = vsub.f32 1.0, %v85
  %v120 = vsub.f32 1.0, %v86
  %v121 = vmul.f32 %v119, %v119
  %v122 = vmul.f32 %v120, %v120
  %v123 = vmul.f32 %v121, %v121
  %v124 = vmul.f32 %v122, %v122
  %v125 = vsub.f32 0.0, %v104
  %v126 = vsub.f32 0.0, %v106
  %v127 = vsub.f32 1.0, %v101
  %v128 = vsub.f32 1.0, %v102
  %v129 = vmul.f32 %v127, %v127
  %v130 = vmul.f32 %v128, %v128
  %v131 = vmul.f32 %v125, %v129
  %v132 = vmul.f32 %v126, %v130
  %v133 = vmul.f32 %v131, %v115
  %v134 = vmul.f32 %v132, %v116
  %v135 = vsub.f32 0.0, %v111
  %v136 = vsub.f32 0.0, %v112
  %v137 = vmul.f32 %v101, %v101
  %v138 = vmul.f32 %v102, %v102
  %v139 = vmul.f32 %v135, %v137
  %v140 = vmul.f32 %v136, %v138
  %v141 = vmul.f32 %v139, %v123
  %v142 = vmul.f32 %v140, %v124
  %v143 = vmul.f32 %v141, %v117
  %v144 = vmul.f32 %v142, %v118
  %v145 = vadd.f32 %v133, %v143
  %v146 = vadd.f32 %v134, %v144
  %v147 = vld [vmem:[#allocation2] sm:$0xff]
  %v148 = vld [vmem:[#allocation2 + $0x8] sm:$0xff]
  %v149 = vadd.f32 %v147, %v145
  %v150 = vadd.f32 %v148, %v146
  %151 = vst [vmem:[#allocation2] sm:$0xff] %v149
  %152 = vst [vmem:[#allocation2 + $0x8] sm:$0xff] %v150
  %v153 = vld [vmem:[#allocation3] sm:$0xff]
  %v154 = vld [vmem:[#allocation3 + $0x8] sm:$0xff]
  %v155 = vadd.f32 %v153, %v115
  %v156 = vadd.f32 %v154, %v116
  %157 = vst [vmem:[#allocation3] sm:$0xff] %v155
  %158 = vst [vmem:[#allocation3 + $0x8] sm:$0xff] %v156
  // Predicated region
  $region14: #{sigmoid_focal_loss.1} parent=0 // pred_check
    %p159 = pneg %p75
  $region15: #{sigmoid_focal_loss.1} parent=0 // pred_check_branch
    %161 = sbr.rel (%p159) target = $region17
  $region16: #{sigmoid_focal_loss.1} parent=0 // pred_region
    %v162 = vld [vmem:[#allocation2] sm:$0xff]
    %v163 = vld [vmem:[#allocation2 + $0x8] sm:$0xff]
    %v164 = vadd.f32 %v162, %v163
    %165 = vadd.xlane.f32.xlu0 %v164
    %v166 = vpop.xlane.xlu0 %165
    %v167 = vrot.slane %v166, 4
    %v168 = vadd.f32 %v166, %v167
    %v169 = vrot.slane %v168, 2
    %v170 = vadd.f32 %v168, %v169
    %v171 = vrot.slane %v170, 1
    %v172 = vadd.f32 %v170, %v171
    %s173 = vtos %v172
    %v174 = vstv %s173
    %175 = vst [vmem:[%s2] sm:$0xff] %v174
    %v176 = vld [vmem:[#allocation3] sm:$0xff]
    %v177 = vld [vmem:[#allocation3 + $0x8] sm:$0xff]
    %v178 = vadd.f32 %v176, %v177
    %179 = vadd.xlane.f32.xlu0 %v178
    %v180 = vpop.xlane.xlu0 %179
    %v181 = vrot.slane %v180, 4
    %v182 = vadd.f32 %v180, %v181
    %v183 = vrot.slane %v182, 2
    %v184 = vadd.f32 %v182, %v183
    %v185 = vrot.slane %v184, 1
    %v186 = vadd.f32 %v184, %v185
    %s187 = vtos %v186
    %v188 = vstv %s187
    %s189 = scalar_lea.vmem %s2, 8
    %190 = vst [vmem:[%s189] sm:$0xff] %v188
  $region17: #{sigmoid_focal_loss.1} parent=0 // pred_fallthru
    _
  // Predicated region
  $region18: #{sigmoid_focal_loss.1} parent=0 // pred_check
    _
  $region19: #{sigmoid_focal_loss.1} parent=0 // pred_check_branch
    %192 = sbr.rel (0) target = $region21
  $region20: #{sigmoid_focal_loss.1} parent=0 // pred_region
    _
  $region21: #{sigmoid_focal_loss.1} parent=0 // pred_fallthru
    _
  // Predicated region
  $region22: #{sigmoid_focal_loss.1} parent=0 // pred_check
    _
  $region23: #{sigmoid_focal_loss.1} parent=0 // pred_check_branch
    %194 = sbr.rel (0) target = $region25
  $region24: #{sigmoid_focal_loss.1} parent=0 // pred_region
    _
  $region25: #{sigmoid_focal_loss.1} parent=0 // pred_fallthru
    _

</llo_original>
